<compile_context>
chip_gen: v5e
topology: v5e:2x2
jax: 0.10.0
libtpu: 0.0.40
codegen_flags: <defaults>
</compile_context>

<pallas_src>
import math
import functools

import jax
import jax.numpy as jnp
from jax.experimental import pallas as pl
from jax.experimental.pallas import tpu as pltpu


def _rmsnorm_kernel(x_ref, w_ref, o_ref, *, eps):
    # x_ref: (block_rows, hidden) in input dtype
    # w_ref: (1, hidden) in weight dtype (resident across all grid steps)
    # o_ref: (block_rows, hidden) in promote(input_dtype, weight_dtype)
    x = x_ref[...].astype(jnp.float32)
    var = jnp.mean(x * x, axis=-1, keepdims=True)            # (block_rows, 1), f32
    inv = jax.lax.rsqrt(var + eps)                            # EUP slot, f32
    # Match PyTorch order: cast normalized activations to the INPUT dtype first,
    # then multiply by weight in the promoted (output) dtype.
    normed = (x * inv).astype(x_ref.dtype)
    o_ref[...] = (w_ref[...].astype(o_ref.dtype)
                  * normed.astype(o_ref.dtype)).astype(o_ref.dtype)


def _sublane_multiple(dtype):
    # 32-bit: 8 rows/vreg-sublane; bf16: 16; int8/fp8: 32.
    return max(8, 32 // jnp.dtype(dtype).itemsize)


def _vmem_capacity_bytes():
    try:
        info = pltpu.get_tpu_info()
        cap = getattr(info, "vmem_capacity_bytes", None)
        if cap:
            return int(cap)
    except Exception:
        pass
    # Conservative fallback = v7x per-TensorCore VMEM.
    return 64 << 20


def deepseek_v2_rmsnorm(hidden_states, weight, *, eps=1e-6, block_rows=None):
    """RMSNorm over the last axis. hidden_states: (..., hidden), weight: (hidden,)."""
    orig_shape = hidden_states.shape
    hidden = orig_shape[-1]
    assert weight.shape == (hidden,)

    in_dtype = hidden_states.dtype
    w_dtype = weight.dtype
    # PyTorch returns `weight * normed.to(input_dtype)` -> promoted dtype, multiply
    # performed in that promoted dtype (bf16 weights => bf16 multiply).
    out_dtype = jnp.result_type(in_dtype, w_dtype)

    rows = int(math.prod(orig_shape[:-1])) if len(orig_shape) > 1 else 1
    x2d = hidden_states.reshape(rows, hidden)
    w2d = weight.reshape(1, hidden)

    in_item = jnp.dtype(in_dtype).itemsize
    out_item = jnp.dtype(out_dtype).itemsize
    sublane = max(_sublane_multiple(in_dtype), _sublane_multiple(out_dtype))

    # VMEM budgeting: double-buffered HBM-dtype input + output tiles plus ~2 f32
    # tile-sized temporaries; leave headroom under an explicit vmem limit.
    vmem_cap = _vmem_capacity_bytes()
    pipeline_budget = vmem_cap // 2                     # ~32 MiB v7x, ~64 MiB v5e/v6e
    vmem_limit = min(int(vmem_cap * 3) // 4, 96 << 20)  # ~48 MiB v7x, 96 MiB v5e/v6e

    if block_rows is None:
        per_row_bytes = hidden * (2 * in_item + 2 * out_item + 2 * 4)
        block_rows = max(1, pipeline_budget // per_row_bytes)

    if rows <= sublane:
        # Single full-extent block (second-to-last block dim == full array dim).
        block_rows = rows
    else:
        # Guarantee >= 2 grid tiles so both v7x TensorCores get work.
        half_rows = -(-(-(-rows // 2)) // sublane) * sublane  # round_up(ceil(rows/2), sublane)
        block_rows = min(int(block_rows), half_rows)
        block_rows = max(sublane, (block_rows // sublane) * sublane)

    num_tiles = pl.cdiv(rows, block_rows)   # ragged tail handled by Pallas masking

    cost = pl.CostEstimate(
        flops=4 * rows * hidden,
        transcendentals=rows,
        bytes_accessed=rows * hidden * (in_item + out_item)
        + hidden * jnp.dtype(w_dtype).itemsize,
    )

    out = pl.pallas_call(
        functools.partial(_rmsnorm_kernel, eps=float(eps)),
        out_shape=jax.ShapeDtypeStruct((rows, hidden), out_dtype),
        grid_spec=pltpu.PrefetchScalarGridSpec(
            num_scalar_prefetch=0,
            grid=(num_tiles,),
            in_specs=[
                pl.BlockSpec((block_rows, hidden), lambda i: (i, 0)),
                pl.BlockSpec((1, hidden), lambda i: (0, 0)),   # resident weight
            ],
            out_specs=pl.BlockSpec((block_rows, hidden), lambda i: (i, 0)),
        ),
        compiler_params=pltpu.CompilerParams(
            dimension_semantics=("parallel",),
            vmem_limit_bytes=int(vmem_limit),
        ),
        cost_estimate=cost,
    )(x2d, w2d)

    return out.reshape(orig_shape[:-1] + (hidden,))


def _reference(hidden_states, weight, eps=1e-6):
    in_dtype = hidden_states.dtype
    out_dtype = jnp.result_type(in_dtype, weight.dtype)
    x = hidden_states.astype(jnp.float32)
    var = jnp.mean(x * x, axis=-1, keepdims=True)
    normed = (x * jax.lax.rsqrt(var + eps)).astype(in_dtype)
    return (weight.astype(out_dtype) * normed.astype(out_dtype)).astype(out_dtype)


if __name__ == "__main__":
    key = jax.random.PRNGKey(0)
    k1, k2, k3, k4 = jax.random.split(key, 4)
    eps = 1e-6
    hidden = 256

    # Case 1: f32, rows divide evenly (batch=2, seq=16).
    x = jax.random.normal(k1, (2, 16, hidden), dtype=jnp.float32)
    w = 1.0 + 0.1 * jax.random.normal(k2, (hidden,), dtype=jnp.float32)
    out = jax.block_until_ready(deepseek_v2_rmsnorm(x, w, eps=eps))
    ref = _reference(x, w, eps=eps)
    assert out.shape == ref.shape and out.dtype == ref.dtype
    assert jnp.allclose(out, ref, atol=1e-5, rtol=1e-5)

    # Case 2: f32, ragged rows (batch=2, seq=13) -> exercises the masked tail tile.
    x2 = jax.random.normal(k3, (2, 13, hidden), dtype=jnp.float32)
    out2 = jax.block_until_ready(deepseek_v2_rmsnorm(x2, w, eps=eps))
    ref2 = _reference(x2, w, eps=eps)
    assert out2.shape == ref2.shape and out2.dtype == ref2.dtype
    assert jnp.allclose(out2, ref2, atol=1e-5, rtol=1e-5)

    # Case 3: bf16 activations with f32 weight -> promoted f32 output, 16-row sublane.
    x3 = jax.random.normal(k4, (2, 16, hidden), dtype=jnp.float32).astype(jnp.bfloat16)
    out3 = jax.block_until_ready(deepseek_v2_rmsnorm(x3, w, eps=eps))
    ref3 = _reference(x3, w, eps=eps)
    assert out3.shape == ref3.shape and out3.dtype == ref3.dtype
    assert jnp.allclose(out3, ref3, atol=2e-2, rtol=2e-2)

    print("KERNEL_OK")
</pallas_src>

<mosaic_0001>
module attributes {stable_mosaic.version = 11 : i64} {
  func.func @_rmsnorm_kernel(%arg0: i32, %arg1: memref<16x256xf32, #tpu.memory_space<vmem>>, %arg2: memref<1x256xf32, #tpu.memory_space<vmem>>, %arg3: memref<16x256xf32, #tpu.memory_space<vmem>>) attributes {dimension_semantics = [#tpu.dimension_semantics<parallel>], iteration_bounds = array<i64: 2>, scalar_prefetch = 0 : i64, scratch_operands = 0 : i64, tpu.core_type = #tpu.core_type<tc>, window_params = [{transform_indices = @transform_0, window_bounds = array<i64: 16, 256>}, {pipeline_mode = #tpu.pipeline_mode<synchronous>, transform_indices = @transform_1, window_bounds = array<i64: 1, 256>}, {transform_indices = @transform_2, window_bounds = array<i64: 16, 256>}]} {
    %c0 = arith.constant 0 : index
    %c0_0 = arith.constant 0 : index
    %0 = vector.load %arg1[%c0, %c0_0] : memref<16x256xf32, #tpu.memory_space<vmem>>, vector<16x256xf32>
    %1 = arith.mulf %0, %0 : vector<16x256xf32>
    %cst = arith.constant dense<0.000000e+00> : vector<16xf32>
    %2 = vector.multi_reduction <add>, %1, %cst [1] : vector<16x256xf32> to vector<16xf32>
    %3 = vector.shape_cast %2 : vector<16xf32> to vector<16x1xf32>
    %cst_1 = arith.constant 2.560000e+02 : f32
    %4 = vector.broadcast %cst_1 : f32 to vector<16x1xf32>
    %5 = arith.divf %3, %4 : vector<16x1xf32>
    %cst_2 = arith.constant 9.99999997E-7 : f32
    %6 = vector.broadcast %cst_2 : f32 to vector<16x1xf32>
    %7 = arith.addf %5, %6 : vector<16x1xf32>
    %8 = math.rsqrt %7 : vector<16x1xf32>
    %9 = vector.broadcast %8 : vector<16x1xf32> to vector<16x256xf32>
    %10 = arith.mulf %0, %9 : vector<16x256xf32>
    %c0_3 = arith.constant 0 : index
    %c0_4 = arith.constant 0 : index
    %11 = vector.load %arg2[%c0_3, %c0_4] : memref<1x256xf32, #tpu.memory_space<vmem>>, vector<1x256xf32>
    %12 = vector.broadcast %11 : vector<1x256xf32> to vector<16x256xf32>
    %13 = arith.mulf %12, %10 : vector<16x256xf32>
    %c0_5 = arith.constant 0 : index
    %c0_6 = arith.constant 0 : index
    %14 = vector.load %arg3[%c0_5, %c0_6] : memref<16x256xf32, #tpu.memory_space<vmem>>, vector<16x256xf32>
    tpu.vector_store %arg3[%c0_5, %c0_6], %13 {strides = array<i32>} : memref<16x256xf32, #tpu.memory_space<vmem>>, vector<16x256xf32>,
    return
  }
  func.func @transform_0(%arg0: i32) -> (i32, i32) {
    %c0_i32 = arith.constant 0 : i32
    %c0_i32_0 = arith.constant 0 : i32
    return %arg0, %c0_i32 : i32, i32
  }
  func.func @transform_1(%arg0: i32) -> (i32, i32) {
    %c0_i32 = arith.constant 0 : i32
    %c0_i32_0 = arith.constant 0 : i32
    %c0_i32_1 = arith.constant 0 : i32
    return %c0_i32, %c0_i32_0 : i32, i32
  }
  func.func @transform_2(%arg0: i32) -> (i32, i32) {
    %c0_i32 = arith.constant 0 : i32
    %c0_i32_0 = arith.constant 0 : i32
    return %arg0, %c0_i32 : i32, i32
  }
}

</mosaic_0001>

<llo_original>
// kernel: tpu_custom_call.1
$region0: #{tpu_custom_call.1}
  #allocation0 [shape = 'u32[]', space=smem, size = 0x4, offset = 0x4, fixed_abs, tag = 'smem constant byte address 0x4 - core index']
  #allocation1 [shape = 'u32[72,128]{1,0:T(1,128)}', space=vmem, size = 0x9000, scoped, tag = 'internal scratch']
  %s0 = inlined_call_operand.hbm [shape: f32[32,256], index: 0, kind: input, shape index: {}]
  %s1 = inlined_call_operand.hbm [shape: f32[1,256], index: 1, kind: input, shape index: {}]
  %s2 = inlined_call_operand.hbm [shape: f32[32,256], index: 2, kind: output, shape index: {}]
  %s3 = sld [smem:[#allocation0]]
  $region49: #{tpu_custom_call.1} parent=0
    _
  %s5 = ssub.s32 1, %s3
  %s6 = scalar_select 0, %s5, %s3
  $region1: #{tpu_custom_call.1} parent=0
    #allocation2 [shape = 'u8[32768]{0}', space=vmem, size = 0x8000, scoped, tag = 'input window, operand 0']
    #allocation3 [shape = 's32[2]{0}', space=sflag, size = 0x8, scoped, tag = 'scoped memory for tpu_custom_call.1']
    #allocation4 [shape = 's32[2]{0}', space=sflag, size = 0x8, scoped, tag = 'scoped memory for tpu_custom_call.1']
    #allocation5 [shape = 'u8[1024]{0}', space=vmem, size = 0x400, scoped, tag = 'input window, operand 1, single buffered']
    #allocation6 [shape = 's32[1]{0}', space=sflag, size = 0x4, scoped, tag = 'scoped memory for tpu_custom_call.1']
    #allocation7 [shape = 'u8[32768]{0}', space=vmem, size = 0x8000, scoped, tag = 'output window, operand 0']
    %7 = vsyncpa [#allocation3], 0
    %s8 = scalar_lea.sflag [#allocation3], 1
    %9 = vsyncpa %s8, 0
    %10 = vsyncpa [#allocation6], 0
    %11 = vsyncpa [#allocation4], 0
    %s12 = scalar_lea.sflag [#allocation4], 1
    %13 = vsyncpa %s12, 0
    loop: start=0, step=1, limit=4
    $region2: #{tpu_custom_call.1} parent=1 // loop_pre_header
      _
    $region3: #{tpu_custom_call.1} parent=1 // loop_header
      %s15 = sphi 0, %s19
      %p16 = scmp.ge.s32.totalorder %s15, 4
      %s25 = sphi 0, %s27
      %s28 = sphi 0, %s25
      %s29 = sphi 0, %s28
      %s45 = sphi 0, %s29
      %s49 = sphi 0, %s49
      %s51 = sphi 0, %s49
      %s52 = sphi 0, %s51
      %s66 = sphi 0, %s52
      %s72 = sphi 0, %s74
      %s75 = sphi 0, %s72
      %s76 = sphi 0, %s75
      %s92 = sphi 0, %s76
    $region4: #{tpu_custom_call.1} parent=1 // loop_header_branch
      %18 = sbr.rel (%p16) target = $region8
    $region5: #{tpu_custom_call.1} parent=1 // loop_body
      %s20 = ssub.s32 %s15, 1
      %s21 = ssub.s32 %s15, 2
      %s22 = sadd.s32 %s15, 1
      %s23 = ssub.s32 %s15, %s22
      %p24 = scmp.eq.s32.totalorder %s23, 0
      %s26 = sadd.s32 %s25, 1
      %s27 = scalar_select %p24, %s25, %s26
      %p30 = pneg %p24
      %p31 = scmp.eq.s32.totalorder %s15, 1
      %p32 = por %p30, %p31
      %p33 = scmp.ne.s32.totalorder %s25, %s28
      %p34 = scmp.eq.s32.totalorder %s15, 0
      %p35 = por %p33, %p34
      %p36 = scmp.ne.s32.totalorder %s25, %s28
      %p37 = scmp.eq.s32.totalorder %s20, 1
      %p38 = por %p36, %p37
      %p39 = scmp.ne.s32.totalorder %s28, %s29
      %p40 = scmp.eq.s32.totalorder %s20, 0
      %p41 = por %p39, %p40
      %p42 = scmp.ne.s32.totalorder %s28, %s29
      %p43 = scmp.eq.s32.totalorder %s21, 1
      %p44 = por %p42, %p43
      %p46 = scmp.ne.s32.totalorder %s29, %s45
      %p47 = scmp.eq.s32.totalorder %s21, 0
      %p48 = por %p46, %p47
      %s50 = sadd.s32 %s49, 1
      %p53 = scmp.eq.s32.totalorder %s15, 1
      %p54 = scmp.ne.s32.totalorder %s49, %s51
      %p55 = scmp.eq.s32.totalorder %s15, 0
      %p56 = por %p54, %p55
      %p57 = scmp.ne.s32.totalorder %s49, %s51
      %p58 = scmp.eq.s32.totalorder %s20, 1
      %p59 = por %p57, %p58
      %p60 = scmp.ne.s32.totalorder %s51, %s52
      %p61 = scmp.eq.s32.totalorder %s20, 0
      %p62 = por %p60, %p61
      %p63 = scmp.ne.s32.totalorder %s51, %s52
      %p64 = scmp.eq.s32.totalorder %s21, 1
      %p65 = por %p63, %p64
      %p67 = scmp.ne.s32.totalorder %s52, %s66
      %p68 = scmp.eq.s32.totalorder %s21, 0
      %p69 = por %p67, %p68
      %s70 = ssub.s32 %s15, %s22
      %p71 = scmp.eq.s32.totalorder %s70, 0
      %s73 = sadd.s32 %s72, 1
      %s74 = scalar_select %p71, %s72, %s73
      %p77 = pneg %p71
      %p78 = scmp.eq.s32.totalorder %s15, 1
      %p79 = por %p77, %p78
      %p80 = scmp.ne.s32.totalorder %s72, %s75
      %p81 = scmp.eq.s32.totalorder %s15, 0
      %p82 = por %p80, %p81
      %p83 = scmp.ne.s32.totalorder %s72, %s75
      %p84 = scmp.eq.s32.totalorder %s20, 1
      %p85 = por %p83, %p84
      %p86 = scmp.ne.s32.totalorder %s75, %s76
      %p87 = scmp.eq.s32.totalorder %s20, 0
      %p88 = por %p86, %p87
      %p89 = scmp.ne.s32.totalorder %s75, %s76
      %p90 = scmp.eq.s32.totalorder %s21, 1
      %p91 = por %p89, %p90
      %p93 = scmp.ne.s32.totalorder %s76, %s92
      %p94 = scmp.eq.s32.totalorder %s21, 0
      %p95 = por %p93, %p94
      %p96 = scmp.le.s32.totalorder 1, %s15
      %p97 = scmp.lt.s32.totalorder %s15, 3
      %p98 = pnand %p96, %p97
      %p99 = pneg %p98
      // Predicated region
      $region9: #{tpu_custom_call.1} parent=5 // pred_check
        _
      $region10: #{tpu_custom_call.1} parent=5 // pred_check_branch
        %101 = sbr.rel (%p98) target = $region12
      $region11: #{tpu_custom_call.1} parent=5 // pred_region
        %s102 = ssub.s32 %s15, 1
        // Predicated region
        $region13: #{tpu_custom_call.1} parent=11 // pred_check
          %p103 = pneg %p62
        $region14: #{tpu_custom_call.1} parent=11 // pred_check_branch
          %105 = sbr.rel (%p103) target = $region16
        $region15: #{tpu_custom_call.1} parent=11 // pred_region
          %107 = vsyncadd [#allocation6], 0
          %s109 = sshll.u32 %s1, 4
          %s110 = int_to_ptr.hbm [resolvable:$true] %s109
          %s111 = sshll.u32 [#allocation5], 4
          %s112 = int_to_ptr.vmem [resolvable:$true] %s111
          %114 = dma.hbm_to_vmem [thread:$0]  %s110, 32, %s112, [#allocation6]
        $region16: #{tpu_custom_call.1} parent=11 // pred_fallthru
          _
      $region12: #{tpu_custom_call.1} parent=5 // pred_fallthru
        _
      %p115 = scmp.lt.s32.totalorder %s15, 2
      // Predicated region
      $region17: #{tpu_custom_call.1} parent=5 // pred_check
        %p116 = pneg %p115
      $region18: #{tpu_custom_call.1} parent=5 // pred_check_branch
        %118 = sbr.rel (%p116) target = $region20
      $region19: #{tpu_custom_call.1} parent=5 // pred_region
        // Predicated region
        $region21: #{tpu_custom_call.1} parent=19 // pred_check
          %p119 = pneg %p35
        $region22: #{tpu_custom_call.1} parent=19 // pred_check_branch
          %121 = sbr.rel (%p119) target = $region24
        $region23: #{tpu_custom_call.1} parent=19 // pred_region
          %s122 = sand.u32 %s25, 1
          %s123 = scalar_lea.sflag [#allocation3], %s122
          %s124 = sand.u32 %s25, 1
          %s125 = smul.addr %s124, 32
          %s126 = scalar_lea.vmem [#allocation2], %s125
          %s127 = smul.u32 2, %s15
          %129 = vsyncadd %s123, 0
          %s130 = smul.addr %s127, 2
          %s131 = smul.addr %s130, 8
          %s132 = scalar_lea.hbm %s0, %s131
          %s133 = sshll.u32 %s132, 4
          %s134 = int_to_ptr.hbm [resolvable:$true] %s133
          %s135 = sshll.u32 %s126, 4
          %s136 = int_to_ptr.vmem [resolvable:$true] %s135
          %141 = dma.hbm_to_vmem [thread:$0]  %s134, 512, %s136, %s123, 256, 256, 16
        $region24: #{tpu_custom_call.1} parent=19 // pred_fallthru
          _
      $region20: #{tpu_custom_call.1} parent=5 // pred_fallthru
        _
      %p142 = scmp.le.s32.totalorder 1, %s15
      %p143 = scmp.lt.s32.totalorder %s15, 3
      %p144 = pnand %p142, %p143
      %p145 = pneg %p144
      // Predicated region
      $region25: #{tpu_custom_call.1} parent=5 // pred_check
        _
      $region26: #{tpu_custom_call.1} parent=5 // pred_check_branch
        %147 = sbr.rel (%p144) target = $region28
      $region27: #{tpu_custom_call.1} parent=5 // pred_region
        %s148 = ssub.s32 %s15, 1
        %s149 = sand.u32 %s28, 1
        %s150 = scalar_lea.sflag [#allocation3], %s149
        %s151 = sand.u32 %s28, 1
        %s152 = smul.addr %s151, 32
        %s153 = scalar_lea.vmem [#allocation2], %s152
        // Predicated region
        $region29: #{tpu_custom_call.1} parent=27 // pred_check
          %p154 = pneg %p41
        $region30: #{tpu_custom_call.1} parent=27 // pred_check_branch
          %156 = sbr.rel (%p154) target = $region32
        $region31: #{tpu_custom_call.1} parent=27 // pred_region
          %158 = dma.done %s150, 512
        $region32: #{tpu_custom_call.1} parent=27 // pred_fallthru
          _
        // Predicated region
        $region33: #{tpu_custom_call.1} parent=27 // pred_check
          %p159 = pneg %p62
        $region34: #{tpu_custom_call.1} parent=27 // pred_check_branch
          %161 = sbr.rel (%p159) target = $region36
        $region35: #{tpu_custom_call.1} parent=27 // pred_region
          %163 = dma.done [#allocation6], 32
        $region36: #{tpu_custom_call.1} parent=27 // pred_fallthru
          _
        %s164 = sand.u32 %s28, 1
        %s165 = scalar_lea.sflag [#allocation3], %s164
        %s166 = sand.u32 %s28, 1
        %s167 = smul.addr %s166, 32
        %s168 = scalar_lea.vmem [#allocation2], %s167
        %p169 = pneg %p41
        %p170 = pneg %p38
        %p171 = pneg %p62
        %p172 = pneg %p59
        %p173 = pneg %p88
        %p174 = pneg %p85
        %s175 = sand.u32 %s75, 1
        %s176 = scalar_lea.sflag [#allocation4], %s175
        %s177 = sand.u32 %s75, 1
        %s178 = smul.addr %s177, 32
        %s179 = scalar_lea.vmem [#allocation7], %s178
        %s180 = smul.u32 2, %s20
        %s181 = smul.u32 2, %s20
        %v182 = vld [vmem:[%s153] sm:$0xff]
        %v183 = vld [vmem:[%s153 + $0x8] sm:$0xff]
        %v184 = vld [vmem:[%s153 + $0x10] sm:$0xff]
        %v185 = vld [vmem:[%s153 + $0x18] sm:$0xff]
        %v186 = vmul.f32 %v182, %v182
        %v187 = vmul.f32 %v183, %v183
        %v188 = vmul.f32 %v184, %v184
        %v189 = vmul.f32 %v185, %v185
        %v190 = vadd.f32 %v186, %v187
        %191 = vadd.xlane.f32.xlu0 %v190
        %v192 = vpop.xlane.xlu0 %191
        %v193 = vadd.f32 %v188, %v189
        %194 = vadd.xlane.f32.xlu0 %v193
        %v195 = vpop.xlane.xlu0 %194
        %v196 = vrcp.pop 256.0
        %v197 = vmul.f32 256.0, %v196
        %v198 = vsub.f32 1.0, %v197
        %v199 = vmul.f32 %v196, %v198
        %v200 = vadd.f32 %v196, %v199
        %vm201 = vweird.f32 %v196
        %v202 = vsel %vm201, %v196, %v200
        %v203 = vmul.f32 %v192, %v202
        %v204 = vmul.f32 %v195, %v202
        %v205 = vadd.f32 %v203, 1e-06
        %v206 = vadd.f32 %v204, 1e-06
        %v207 = vrsqrt.pop %v205
        %v208 = vmul.f32 %v207, %v205
        %v209 = vmul.f32 %v208, %v207
        %v210 = vmul.f32 0.5, %v209
        %v211 = vsub.f32 1.5, %v210
        %v212 = vmul.f32 %v207, %v211
        %vm213 = vweird.f32 %v205
        %vm214 = vweird.f32 %v207
        %vm215 = vmor %vm213, %vm214
        %v216 = vsel %vm215, %v207, %v212
        %v217 = vrsqrt.pop %v206
        %v218 = vmul.f32 %v217, %v206
        %v219 = vmul.f32 %v218, %v217
        %v220 = vmul.f32 0.5, %v219
        %v221 = vsub.f32 1.5, %v220
        %v222 = vmul.f32 %v217, %v221
        %vm223 = vweird.f32 %v206
        %vm224 = vweird.f32 %v217
        %vm225 = vmor %vm223, %vm224
        %v226 = vsel %vm225, %v217, %v222
        %v227 = vmul.f32 %v182, %v216
        %v228 = vmul.f32 %v183, %v216
        %v229 = vmul.f32 %v184, %v226
        %v230 = vmul.f32 %v185, %v226
        %v231 = vld [vmem:[#allocation5] sm:$0x3]
        %v233 = vperm.slane %v231, 0
        %v234 = vperm.slane %v231, 1
        %v237 = vmul.f32 %v233, %v227
        %v238 = vmul.f32 %v234, %v228
        %v239 = vmul.f32 %v233, %v229
        %v240 = vmul.f32 %v234, %v230
        %241 = vst [vmem:[%s179] sm:$0xff] %v237
        %242 = vst [vmem:[%s179 + $0x8] sm:$0xff] %v238
        %243 = vst [vmem:[%s179 + $0x10] sm:$0xff] %v239
        %244 = vst [vmem:[%s179 + $0x18] sm:$0xff] %v240
        %s245 = sand.u32 %s75, 1
        %s246 = scalar_lea.sflag [#allocation4], %s245
        %s247 = sand.u32 %s75, 1
        %s248 = smul.addr %s247, 32
        %s249 = scalar_lea.vmem [#allocation7], %s248
        // Predicated region
        $region37: #{tpu_custom_call.1} parent=27 // pred_check
          %p250 = pneg %p85
        $region38: #{tpu_custom_call.1} parent=27 // pred_check_branch
          %252 = sbr.rel (%p250) target = $region40
        $region39: #{tpu_custom_call.1} parent=27 // pred_region
          %s253 = smul.u32 2, %s20
          %255 = vsyncadd %s246, 0
          %s256 = smul.addr %s253, 2
          %s257 = smul.addr %s256, 8
          %s258 = scalar_lea.hbm %s2, %s257
          %s259 = sshll.u32 %s249, 4
          %s260 = int_to_ptr.vmem [resolvable:$true] %s259
          %s261 = sshll.u32 %s258, 4
          %s262 = int_to_ptr.hbm [resolvable:$true] %s261
          %267 = dma.vmem_to_hbm [thread:$0]  %s260, 512, %s262, %s246, 256, 256, 16
        $region40: #{tpu_custom_call.1} parent=27 // pred_fallthru
          _
      $region28: #{tpu_custom_call.1} parent=5 // pred_fallthru
        _
      %p268 = scmp.le.s32.totalorder 2, %s15
      // Predicated region
      $region41: #{tpu_custom_call.1} parent=5 // pred_check
        %p269 = pneg %p268
      $region42: #{tpu_custom_call.1} parent=5 // pred_check_branch
        %271 = sbr.rel (%p269) target = $region44
      $region43: #{tpu_custom_call.1} parent=5 // pred_region
        %s272 = ssub.s32 %s15, 2
        // Predicated region
        $region45: #{tpu_custom_call.1} parent=43 // pred_check
          %p273 = pneg %p91
        $region46: #{tpu_custom_call.1} parent=43 // pred_check_branch
          %275 = sbr.rel (%p273) target = $region48
        $region47: #{tpu_custom_call.1} parent=43 // pred_region
          %s276 = sand.u32 %s76, 1
          %s277 = scalar_lea.sflag [#allocation4], %s276
          %s278 = sand.u32 %s76, 1
          %s279 = smul.addr %s278, 32
          %s280 = scalar_lea.vmem [#allocation7], %s279
          %282 = dma.done %s277, 512
        $region48: #{tpu_custom_call.1} parent=43 // pred_fallthru
          _
      $region44: #{tpu_custom_call.1} parent=5 // pred_fallthru
        _
    $region6: #{tpu_custom_call.1} parent=1 // loop_footer
      %s19 = sadd.s32 1, %s15
    $region7: #{tpu_custom_call.1} parent=1 // loop_footer_branch
      %14 = sbr.rel target = $region3
    $region8: #{tpu_custom_call.1} parent=1 // loop_exit
      _
    %283 = vsyncpa [#allocation3], 1
    %s284 = scalar_lea.sflag [#allocation3], 1
    %285 = vsyncpa %s284, 1
    %286 = vsyncpa [#allocation6], 1
    %287 = vsyncpa [#allocation4], 1
    %s288 = scalar_lea.sflag [#allocation4], 1
    %289 = vsyncpa %s288, 1

</llo_original>
